<compile_context>
chip_gen: v7x
topology: tpu7x:2x2x1
jax: 0.10.0
libtpu: 0.0.40
codegen_flags: <defaults>
</compile_context>

<pallas_src>
import functools

import jax
import jax.numpy as jnp
from jax import lax
from jax.experimental import pallas as pl
from jax.experimental.pallas import tpu as pltpu

BN_EPS = 1e-5   # torch.nn.BatchNorm1d default
LANE = 128
SUBLANE = 8


def _round_up(x, m):
    return (x + m - 1) // m * m


def _fold_bn(w, b, gamma, beta, mean, var):
    """Fold an eval-mode BatchNorm1d that follows `y = x @ w + b` into (w, b)."""
    scale = gamma / jnp.sqrt(var + BN_EPS)              # (1, D)
    return w * scale, (b - mean) * scale + beta


# --------------------------------------------------------------------------- #
# Pallas kernel: one GIN_VN layer for one row slab of nodes.
# --------------------------------------------------------------------------- #
def gin_layer_kernel(adj_ref, h_ref, w1_ref, w2_ref, b_ref, out_ref,
                     *, row_tile, apply_relu):
    """
    adj_ref: (row_tile, Np)  compute dtype  A[dst, src] row slab (streamed)
    h_ref:   (Np, Dp)        f32            full node features (resident K operand)
    w1_ref:  (Dp, Dp)        compute dtype  BN-folded Linear1 weight, [in, out]
    w2_ref:  (Dp, Dp)        compute dtype  BN-folded Linear2 weight, [in, out]
    b_ref:   (2, Dp)         f32            stacked folded biases [b1'; b2']
    out_ref: (row_tile, Dp)  f32
    """
    cdt = w1_ref.dtype
    i = pl.program_id(0)
    row0 = pl.multiple_of(i * row_tile, row_tile)

    h_full = h_ref[...]                                   # (Np, Dp)  f32
    h_slab = h_ref[pl.ds(row0, row_tile), :]              # (row_tile, Dp) f32
    bias = b_ref[...]                                     # (2, Dp)   f32

    # GINConv.propagate(aggr='add'), message = relu(x_j):  A_slab @ relu(h)
    aggr = jnp.dot(adj_ref[...], jnp.maximum(h_full, 0.0).astype(cdt),
                   preferred_element_type=jnp.float32)
    z = h_slab + aggr                                      # f32 epilogue

    # GINConv.mlp with eval-mode BNs folded: Linear1' -> ReLU -> Linear2'
    z1 = jnp.dot(z.astype(cdt), w1_ref[...],
                 preferred_element_type=jnp.float32) + bias[0:1, :]
    z1 = jnp.maximum(z1, 0.0)
    z2 = jnp.dot(z1.astype(cdt), w2_ref[...],
                 preferred_element_type=jnp.float32) + bias[1:2, :]

    if apply_relu:                                         # all layers but the last
        z2 = jnp.maximum(z2, 0.0)
    out_ref[...] = z2


def gin_layer(adj, h, w1, w2, b, *, row_tile, apply_relu):
    Np, Dp = h.shape
    n_tiles = Np // row_tile
    kern = functools.partial(gin_layer_kernel,
                             row_tile=row_tile, apply_relu=apply_relu)
    return pl.pallas_call(
        kern,
        out_shape=jax.ShapeDtypeStruct((Np, Dp), jnp.float32),
        grid_spec=pltpu.PrefetchScalarGridSpec(
            num_scalar_prefetch=0,
            grid=(n_tiles,),
            in_specs=[
                pl.BlockSpec((row_tile, Np), lambda i: (i, 0)),   # adj row slab
                pl.BlockSpec((Np, Dp), lambda i: (0, 0)),         # full h (resident)
                pl.BlockSpec((Dp, Dp), lambda i: (0, 0)),         # w1'
                pl.BlockSpec((Dp, Dp), lambda i: (0, 0)),         # w2'
                pl.BlockSpec((2, Dp), lambda i: (0, 0)),          # [b1'; b2']
            ],
            out_specs=pl.BlockSpec((row_tile, Dp), lambda i: (i, 0)),
        ),
        compiler_params=pltpu.CompilerParams(
            # row tiles are independent -> shard across v7x's 2 TensorCores
            dimension_semantics=("parallel",),
            # explicit budget, safely under v7x's 64 MiB physical VMEM
            vmem_limit_bytes=48 * 1024 * 1024,
        ),
    )(adj, h, w1, w2, b)


# --------------------------------------------------------------------------- #
# Host wrapper: padding, dense adjacency, BN folding, per-layer pallas_call.
# --------------------------------------------------------------------------- #
def gin_vn_forward(x, edge_index, params, num_layers,
                   *, row_tile=256, compute_dtype=jnp.bfloat16):
    """GIN_VN.forward (eval mode, residual=False, edge_attr=None).

    The `batch` argument of GIN_VN.forward is unused there, so it is unused here.
    """
    N, D = x.shape
    Dp = _round_up(D, LANE)                       # lane-dense feature dim
    row_tile = min(row_tile, _round_up(N, SUBLANE))
    row_tile = _round_up(row_tile, SUBLANE)
    Np = _round_up(N, row_tile)                   # row-tile-aligned node count

    src, dst = edge_index[0], edge_index[1]
    # Dense A[dst, src]; duplicate edges accumulate; padded rows/cols stay zero.
    # Counts are small integers -> exact in bf16.
    adj = (jnp.zeros((Np, Np), jnp.float32).at[dst, src].add(1.0)
           .astype(compute_dtype))

    # h kept in f32 HBM between layers; padded rows/lanes start at zero.
    h = jnp.zeros((Np, Dp), jnp.float32).at[:N, :D].set(x)

    for layer in range(num_layers):
        p = params[layer]
        w1, b1 = _fold_bn(p["w1"], p["b1"], p["g1"], p["be1"], p["m1"], p["v1"])
        w2, b2 = _fold_bn(p["w2"], p["b2"], p["g2"], p["be2"], p["m2"], p["v2"])
        w1p = jnp.zeros((Dp, Dp), compute_dtype).at[:D, :D].set(w1.astype(compute_dtype))
        w2p = jnp.zeros((Dp, Dp), compute_dtype).at[:D, :D].set(w2.astype(compute_dtype))
        bp = (jnp.zeros((2, Dp), jnp.float32)
              .at[0:1, :D].set(b1)
              .at[1:2, :D].set(b2))
        h = gin_layer(adj, h, w1p, w2p, bp,
                      row_tile=row_tile,
                      apply_relu=(layer != num_layers - 1))
    return h[:N, :D]


# --------------------------------------------------------------------------- #
# References.
# --------------------------------------------------------------------------- #
def gin_vn_reference(x, edge_index, params, num_layers, *, precision=None):
    """Pure f32, unfolded-BN reference = the PyTorch module semantics (eval)."""
    N = x.shape[0]
    src, dst = edge_index[0], edge_index[1]
    adj = jnp.zeros((N, N), jnp.float32).at[dst, src].add(1.0)
    h = x
    for layer in range(num_layers):
        p = params[layer]
        aggr = jnp.dot(adj, jnp.maximum(h, 0.0), precision=precision)
        z = h + aggr
        z1 = jnp.dot(z, p["w1"], precision=precision) + p["b1"]
        z1 = (z1 - p["m1"]) / jnp.sqrt(p["v1"] + BN_EPS) * p["g1"] + p["be1"]
        z1 = jnp.maximum(z1, 0.0)
        z2 = jnp.dot(z1, p["w2"], precision=precision) + p["b2"]
        z2 = (z2 - p["m2"]) / jnp.sqrt(p["v2"] + BN_EPS) * p["g2"] + p["be2"]
        if layer != num_layers - 1:
            z2 = jnp.maximum(z2, 0.0)
        h = z2
    return h


def gin_vn_reference_matched(x, edge_index, params, num_layers, compute_dtype,
                             *, precision=None):
    """Reference mirroring the kernel numerics (BN folding + compute_dtype matmuls)."""
    N = x.shape[0]
    src, dst = edge_index[0], edge_index[1]
    adj = (jnp.zeros((N, N), jnp.float32).at[dst, src].add(1.0)
           .astype(compute_dtype))
    h = x
    for layer in range(num_layers):
        p = params[layer]
        w1, b1 = _fold_bn(p["w1"], p["b1"], p["g1"], p["be1"], p["m1"], p["v1"])
        w2, b2 = _fold_bn(p["w2"], p["b2"], p["g2"], p["be2"], p["m2"], p["v2"])
        w1 = w1.astype(compute_dtype)
        w2 = w2.astype(compute_dtype)
        aggr = jnp.dot(adj, jnp.maximum(h, 0.0).astype(compute_dtype),
                       preferred_element_type=jnp.float32, precision=precision)
        z = h + aggr
        z1 = jnp.dot(z.astype(compute_dtype), w1,
                     preferred_element_type=jnp.float32, precision=precision) + b1
        z1 = jnp.maximum(z1, 0.0)
        z2 = jnp.dot(z1.astype(compute_dtype), w2,
                     preferred_element_type=jnp.float32, precision=precision) + b2
        if layer != num_layers - 1:
            z2 = jnp.maximum(z2, 0.0)
        h = z2
    return h


def init_params(key, num_layers, emb_dim):
    params = []
    for _ in range(num_layers):
        key, *ks = jax.random.split(key, 13)
        params.append({
            # GINConv.mlp Linear1 (stored [in, out]) / BatchNorm1d (eval stats)
            "w1": 0.1 * jax.random.normal(ks[0], (emb_dim, emb_dim), jnp.float32),
            "b1": 0.05 * jax.random.normal(ks[1], (1, emb_dim), jnp.float32),
            "g1": 1.0 + 0.1 * jax.random.normal(ks[2], (1, emb_dim), jnp.float32),
            "be1": 0.05 * jax.random.normal(ks[3], (1, emb_dim), jnp.float32),
            "m1": 0.05 * jax.random.normal(ks[4], (1, emb_dim), jnp.float32),
            "v1": 1.0 + 0.1 * jnp.abs(jax.random.normal(ks[5], (1, emb_dim), jnp.float32)),
            # GINConv.mlp Linear2 / outer batch_norms[layer]
            "w2": 0.1 * jax.random.normal(ks[6], (emb_dim, emb_dim), jnp.float32),
            "b2": 0.05 * jax.random.normal(ks[7], (1, emb_dim), jnp.float32),
            "g2": 1.0 + 0.1 * jax.random.normal(ks[8], (1, emb_dim), jnp.float32),
            "be2": 0.05 * jax.random.normal(ks[9], (1, emb_dim), jnp.float32),
            "m2": 0.05 * jax.random.normal(ks[10], (1, emb_dim), jnp.float32),
            "v2": 1.0 + 0.1 * jnp.abs(jax.random.normal(ks[11], (1, emb_dim), jnp.float32)),
        })
    return params


if __name__ == "__main__":
    num_layers = 3
    emb_dim = 64      # deliberately < 128 -> exercises lane padding to 128
    num_nodes = 200   # deliberately not a row-tile multiple -> exercises row padding
    num_edges = 400

    key = jax.random.PRNGKey(0)
    k_x, k_src, k_dst, k_p = jax.random.split(key, 4)

    x = jax.random.normal(k_x, (num_nodes, emb_dim), jnp.float32)
    edge_index = jnp.stack([
        jax.random.randint(k_src, (num_edges,), 0, num_nodes),
        jax.random.randint(k_dst, (num_edges,), 0, num_nodes),
    ], axis=0).astype(jnp.int32)
    params = init_params(k_p, num_layers, emb_dim)

    # Production config: bf16 MXU operands, f32 accumulation, tiled + parallel rows.
    out = gin_vn_forward(x, edge_index, params, num_layers,
                         row_tile=128, compute_dtype=jnp.bfloat16)
    out = jax.block_until_ready(out)
    assert out.shape == (num_nodes, emb_dim)

    # Check 1 (tight): kernel == same op sequence / dtype policy in plain JAX.
    ref_matched = gin_vn_reference_matched(x, edge_index, params, num_layers,
                                           jnp.bfloat16)
    assert jnp.allclose(out, ref_matched, atol=2e-3, rtol=2e-3), \
        "bf16 kernel mismatch vs matched JAX reference"

    # Check 2 (tight, pure XLA): the BN-folded / restructured math used by the
    # kernel is algebraically identical to the module semantics in f32.  The only
    # remaining gap between the kernel and the module is bf16 MXU quantization,
    # which is the intended dtype policy.
    ref_f32_matched = gin_vn_reference_matched(
        x, edge_index, params, num_layers, jnp.float32,
        precision=lax.Precision.HIGHEST)
    ref_f32_module = gin_vn_reference(
        x, edge_index, params, num_layers, precision=lax.Precision.HIGHEST)
    assert jnp.allclose(ref_f32_matched, ref_f32_module, atol=1e-3, rtol=1e-3), \
        "BN folding / restructuring deviates from module semantics"

    print("KERNEL_OK")
</pallas_src>

<mosaic_0001>
module attributes {stable_mosaic.version = 11 : i64} {
  func.func @gin_layer_kernel(%arg0: i32, %arg1: memref<128x256xbf16, #tpu.memory_space<vmem>>, %arg2: memref<256x128xf32, #tpu.memory_space<vmem>>, %arg3: memref<128x128xbf16, #tpu.memory_space<vmem>>, %arg4: memref<128x128xbf16, #tpu.memory_space<vmem>>, %arg5: memref<2x128xf32, #tpu.memory_space<vmem>>, %arg6: memref<128x128xf32, #tpu.memory_space<vmem>>) attributes {dimension_semantics = [#tpu.dimension_semantics<parallel>], iteration_bounds = array<i64: 2>, scalar_prefetch = 0 : i64, scratch_operands = 0 : i64, tpu.core_type = #tpu.core_type<tc>, window_params = [{transform_indices = @transform_0, window_bounds = array<i64: 128, 256>}, {pipeline_mode = #tpu.pipeline_mode<synchronous>, transform_indices = @transform_1, window_bounds = array<i64: 256, 128>}, {pipeline_mode = #tpu.pipeline_mode<synchronous>, transform_indices = @transform_2, window_bounds = array<i64: 128, 128>}, {pipeline_mode = #tpu.pipeline_mode<synchronous>, transform_indices = @transform_3, window_bounds = array<i64: 128, 128>}, {pipeline_mode = #tpu.pipeline_mode<synchronous>, transform_indices = @transform_4, window_bounds = array<i64: 2, 128>}, {transform_indices = @transform_5, window_bounds = array<i64: 128, 128>}]} {
    %c128_i32 = arith.constant 128 : i32
    %0 = arith.muli %arg0, %c128_i32 : i32
    %1 = tpu.assume_multiple %0, 128 : i32
    %c0 = arith.constant 0 : index
    %c0_0 = arith.constant 0 : index
    %2 = vector.load %arg2[%c0, %c0_0] : memref<256x128xf32, #tpu.memory_space<vmem>>, vector<256x128xf32>
    %3 = arith.index_cast %1 : i32 to index
    %c0_1 = arith.constant 0 : index
    %4 = vector.load %arg2[%3, %c0_1] : memref<256x128xf32, #tpu.memory_space<vmem>>, vector<128x128xf32>
    %c0_2 = arith.constant 0 : index
    %c0_3 = arith.constant 0 : index
    %5 = vector.load %arg5[%c0_2, %c0_3] : memref<2x128xf32, #tpu.memory_space<vmem>>, vector<2x128xf32>
    %c0_4 = arith.constant 0 : index
    %c0_5 = arith.constant 0 : index
    %6 = vector.load %arg1[%c0_4, %c0_5] : memref<128x256xbf16, #tpu.memory_space<vmem>>, vector<128x256xbf16>
    %cst = arith.constant 0.000000e+00 : f32
    %7 = vector.broadcast %cst : f32 to vector<256x128xf32>
    %8 = arith.maximumf %2, %7 : vector<256x128xf32>
    %9 = arith.truncf %8 : vector<256x128xf32> to vector<256x128xbf16>
    %cst_6 = arith.constant dense<0.000000e+00> : vector<128x128xf32>
    %10 = tpu.matmul %6, %9, %cst_6 {dimension_numbers = #tpu.dot_dimension_numbers<[1], [0], [0], [1], [0, 0, 1, 1], [], []>} : vector<128x256xbf16>, vector<256x128xbf16>, vector<128x128xf32> -> vector<128x128xf32>
    %11 = arith.addf %4, %10 : vector<128x128xf32>
    %12 = arith.truncf %11 : vector<128x128xf32> to vector<128x128xbf16>
    %c0_7 = arith.constant 0 : index
    %c0_8 = arith.constant 0 : index
    %13 = vector.load %arg3[%c0_7, %c0_8] : memref<128x128xbf16, #tpu.memory_space<vmem>>, vector<128x128xbf16>
    %cst_9 = arith.constant dense<0.000000e+00> : vector<128x128xf32>
    %14 = tpu.matmul %12, %13, %cst_9 {dimension_numbers = #tpu.dot_dimension_numbers<[1], [0], [0], [1], [0, 0, 1, 1], [], []>} : vector<128x128xbf16>, vector<128x128xbf16>, vector<128x128xf32> -> vector<128x128xf32>
    %15 = vector.extract_strided_slice %5 {offsets = [0, 0], sizes = [1, 128], strides = [1, 1]} : vector<2x128xf32> to vector<1x128xf32>
    %16 = vector.broadcast %15 : vector<1x128xf32> to vector<128x128xf32>
    %17 = arith.addf %14, %16 : vector<128x128xf32>
    %cst_10 = arith.constant 0.000000e+00 : f32
    %18 = vector.broadcast %cst_10 : f32 to vector<128x128xf32>
    %19 = arith.maximumf %17, %18 : vector<128x128xf32>
    %20 = arith.truncf %19 : vector<128x128xf32> to vector<128x128xbf16>
    %c0_11 = arith.constant 0 : index
    %c0_12 = arith.constant 0 : index
    %21 = vector.load %arg4[%c0_11, %c0_12] : memref<128x128xbf16, #tpu.memory_space<vmem>>, vector<128x128xbf16>
    %cst_13 = arith.constant dense<0.000000e+00> : vector<128x128xf32>
    %22 = tpu.matmul %20, %21, %cst_13 {dimension_numbers = #tpu.dot_dimension_numbers<[1], [0], [0], [1], [0, 0, 1, 1], [], []>} : vector<128x128xbf16>, vector<128x128xbf16>, vector<128x128xf32> -> vector<128x128xf32>
    %23 = vector.extract_strided_slice %5 {offsets = [1, 0], sizes = [1, 128], strides = [1, 1]} : vector<2x128xf32> to vector<1x128xf32>
    %24 = vector.broadcast %23 : vector<1x128xf32> to vector<128x128xf32>
    %25 = arith.addf %22, %24 : vector<128x128xf32>
    %cst_14 = arith.constant 0.000000e+00 : f32
    %26 = vector.broadcast %cst_14 : f32 to vector<128x128xf32>
    %27 = arith.maximumf %25, %26 : vector<128x128xf32>
    %c0_15 = arith.constant 0 : index
    %c0_16 = arith.constant 0 : index
    %28 = vector.load %arg6[%c0_15, %c0_16] : memref<128x128xf32, #tpu.memory_space<vmem>>, vector<128x128xf32>
    tpu.vector_store %arg6[%c0_15, %c0_16], %27 {strides = array<i32>} : memref<128x128xf32, #tpu.memory_space<vmem>>, vector<128x128xf32>,
    return
  }
  func.func @transform_0(%arg0: i32) -> (i32, i32) {
    %c0_i32 = arith.constant 0 : i32
    %c0_i32_0 = arith.constant 0 : i32
    return %arg0, %c0_i32 : i32, i32
  }
  func.func @transform_1(%arg0: i32) -> (i32, i32) {
    %c0_i32 = arith.constant 0 : i32
    %c0_i32_0 = arith.constant 0 : i32
    %c0_i32_1 = arith.constant 0 : i32
    return %c0_i32, %c0_i32_0 : i32, i32
  }
  func.func @transform_2(%arg0: i32) -> (i32, i32) {
    %c0_i32 = arith.constant 0 : i32
    %c0_i32_0 = arith.constant 0 : i32
    %c0_i32_1 = arith.constant 0 : i32
    return %c0_i32, %c0_i32_0 : i32, i32
  }
  func.func @transform_3(%arg0: i32) -> (i32, i32) {
    %c0_i32 = arith.constant 0 : i32
    %c0_i32_0 = arith.constant 0 : i32
    %c0_i32_1 = arith.constant 0 : i32
    return %c0_i32, %c0_i32_0 : i32, i32
  }
  func.func @transform_4(%arg0: i32) -> (i32, i32) {
    %c0_i32 = arith.constant 0 : i32
    %c0_i32_0 = arith.constant 0 : i32
    %c0_i32_1 = arith.constant 0 : i32
    return %c0_i32, %c0_i32_0 : i32, i32
  }
  func.func @transform_5(%arg0: i32) -> (i32, i32) {
    %c0_i32 = arith.constant 0 : i32
    %c0_i32_0 = arith.constant 0 : i32
    return %arg0, %c0_i32 : i32, i32
  }
}

</mosaic_0001>

<llo_original>
// kernel: tpu_custom_call.1
$region0: #{tpu_custom_call.1}
  #allocation0 [shape = 'u32[]', space=smem, size = 0x4, offset = 0x4, fixed_abs, tag = 'smem constant byte address 0x4 - core index']
  #allocation1 [shape = 'u32[144,128]{1,0:T(1,128)}', space=vmem, size = 0x12000, scoped, tag = 'internal scratch']
  %s0 = inlined_call_operand.hbm [shape: bf16[256,256], index: 0, kind: input, shape index: {}]
  %s1 = inlined_call_operand.hbm [shape: f32[256,128], index: 1, kind: input, shape index: {}]
  %s2 = inlined_call_operand.hbm [shape: bf16[128,128], index: 2, kind: input, shape index: {}]
  %s3 = inlined_call_operand.hbm [shape: bf16[128,128], index: 3, kind: input, shape index: {}]
  %s4 = inlined_call_operand.vmem [shape: f32[2,128], index: 4, kind: input, shape index: {}]
  %s5 = inlined_call_operand.hbm [shape: f32[256,128], index: 5, kind: output, shape index: {}]
  %s6 = sld [smem:[#allocation0]]
  $region69: #{tpu_custom_call.1} parent=0
    _
  %s8 = ssub.s32 1, %s6
  %s9 = scalar_select 0, %s8, %s6
  $region1: #{tpu_custom_call.1} parent=0
    #allocation2 [shape = 'u8[131072]{0}', space=vmem, size = 0x20000, scoped, tag = 'input window, operand 0']
    #allocation3 [shape = 's32[2]{0}', space=sflag, size = 0x8, scoped, tag = 'scoped memory for tpu_custom_call.1']
    #allocation4 [shape = 's32[2]{0}', space=sflag, size = 0x8, scoped, tag = 'scoped memory for tpu_custom_call.1']
    #allocation5 [shape = 'u8[131072]{0}', space=vmem, size = 0x20000, scoped, tag = 'input window, operand 1, single buffered']
    #allocation6 [shape = 's32[1]{0}', space=sflag, size = 0x4, scoped, tag = 'scoped memory for tpu_custom_call.1']
    #allocation7 [shape = 'u8[32768]{0}', space=vmem, size = 0x8000, scoped, tag = 'input window, operand 2, single buffered']
    #allocation8 [shape = 'u8[32768]{0}', space=vmem, size = 0x8000, scoped, tag = 'input window, operand 3, single buffered']
    #allocation9 [shape = 's32[1]{0}', space=sflag, size = 0x4, scoped, tag = 'scoped memory for tpu_custom_call.1']
    #allocation10 [shape = 'u8[131072]{0}', space=vmem, size = 0x20000, scoped, tag = 'output window, operand 0']
    %10 = vsyncpa [#allocation3], 0
    %s11 = scalar_lea.sflag [#allocation3], 1
    %12 = vsyncpa %s11, 0
    %13 = vsyncpa [#allocation6], 0
    %14 = vsyncpa [#allocation9], 0
    %15 = vsyncpa [#allocation4], 0
    %s16 = scalar_lea.sflag [#allocation4], 1
    %17 = vsyncpa %s16, 0
    loop: start=0, step=1, limit=4
    $region2: #{tpu_custom_call.1} parent=1 // loop_pre_header
      _
    $region3: #{tpu_custom_call.1} parent=1 // loop_header
      %s19 = sphi 0, %s23
      %p20 = scmp.ge.s32.totalorder %s19, 4
      %s29 = sphi 0, %s31
      %s32 = sphi 0, %s29
      %s33 = sphi 0, %s32
      %s49 = sphi 0, %s33
      %s53 = sphi 0, %s53
      %s55 = sphi 0, %s53
      %s56 = sphi 0, %s55
      %s70 = sphi 0, %s56
      %s74 = sphi 0, %s74
      %s76 = sphi 0, %s74
      %s77 = sphi 0, %s76
      %s91 = sphi 0, %s77
      %s95 = sphi 0, %s95
      %s97 = sphi 0, %s95
      %s98 = sphi 0, %s97
      %s112 = sphi 0, %s98
      %s116 = sphi 0, %s116
      %s118 = sphi 0, %s116
      %s119 = sphi 0, %s118
      %s133 = sphi 0, %s119
      %s139 = sphi 0, %s141
      %s142 = sphi 0, %s139
      %s143 = sphi 0, %s142
      %s159 = sphi 0, %s143
    $region4: #{tpu_custom_call.1} parent=1 // loop_header_branch
      %22 = sbr.rel (%p20) target = $region8
    $region5: #{tpu_custom_call.1} parent=1 // loop_body
      %s24 = ssub.s32 %s19, 1
      %s25 = ssub.s32 %s19, 2
      %s26 = sadd.s32 %s19, 1
      %s27 = ssub.s32 %s19, %s26
      %p28 = scmp.eq.s32.totalorder %s27, 0
      %s30 = sadd.s32 %s29, 1
      %s31 = scalar_select %p28, %s29, %s30
      %p34 = pneg %p28
      %p35 = scmp.eq.s32.totalorder %s19, 1
      %p36 = por %p34, %p35
      %p37 = scmp.ne.s32.totalorder %s29, %s32
      %p38 = scmp.eq.s32.totalorder %s19, 0
      %p39 = por %p37, %p38
      %p40 = scmp.ne.s32.totalorder %s29, %s32
      %p41 = scmp.eq.s32.totalorder %s24, 1
      %p42 = por %p40, %p41
      %p43 = scmp.ne.s32.totalorder %s32, %s33
      %p44 = scmp.eq.s32.totalorder %s24, 0
      %p45 = por %p43, %p44
      %p46 = scmp.ne.s32.totalorder %s32, %s33
      %p47 = scmp.eq.s32.totalorder %s25, 1
      %p48 = por %p46, %p47
      %p50 = scmp.ne.s32.totalorder %s33, %s49
      %p51 = scmp.eq.s32.totalorder %s25, 0
      %p52 = por %p50, %p51
      %s54 = sadd.s32 %s53, 1
      %p57 = scmp.eq.s32.totalorder %s19, 1
      %p58 = scmp.ne.s32.totalorder %s53, %s55
      %p59 = scmp.eq.s32.totalorder %s19, 0
      %p60 = por %p58, %p59
      %p61 = scmp.ne.s32.totalorder %s53, %s55
      %p62 = scmp.eq.s32.totalorder %s24, 1
      %p63 = por %p61, %p62
      %p64 = scmp.ne.s32.totalorder %s55, %s56
      %p65 = scmp.eq.s32.totalorder %s24, 0
      %p66 = por %p64, %p65
      %p67 = scmp.ne.s32.totalorder %s55, %s56
      %p68 = scmp.eq.s32.totalorder %s25, 1
      %p69 = por %p67, %p68
      %p71 = scmp.ne.s32.totalorder %s56, %s70
      %p72 = scmp.eq.s32.totalorder %s25, 0
      %p73 = por %p71, %p72
      %s75 = sadd.s32 %s74, 1
      %p78 = scmp.eq.s32.totalorder %s19, 1
      %p79 = scmp.ne.s32.totalorder %s74, %s76
      %p80 = scmp.eq.s32.totalorder %s19, 0
      %p81 = por %p79, %p80
      %p82 = scmp.ne.s32.totalorder %s74, %s76
      %p83 = scmp.eq.s32.totalorder %s24, 1
      %p84 = por %p82, %p83
      %p85 = scmp.ne.s32.totalorder %s76, %s77
      %p86 = scmp.eq.s32.totalorder %s24, 0
      %p87 = por %p85, %p86
      %p88 = scmp.ne.s32.totalorder %s76, %s77
      %p89 = scmp.eq.s32.totalorder %s25, 1
      %p90 = por %p88, %p89
      %p92 = scmp.ne.s32.totalorder %s77, %s91
      %p93 = scmp.eq.s32.totalorder %s25, 0
      %p94 = por %p92, %p93
      %s96 = sadd.s32 %s95, 1
      %p99 = scmp.eq.s32.totalorder %s19, 1
      %p100 = scmp.ne.s32.totalorder %s95, %s97
      %p101 = scmp.eq.s32.totalorder %s19, 0
      %p102 = por %p100, %p101
      %p103 = scmp.ne.s32.totalorder %s95, %s97
      %p104 = scmp.eq.s32.totalorder %s24, 1
      %p105 = por %p103, %p104
      %p106 = scmp.ne.s32.totalorder %s97, %s98
      %p107 = scmp.eq.s32.totalorder %s24, 0
      %p108 = por %p106, %p107
      %p109 = scmp.ne.s32.totalorder %s97, %s98
      %p110 = scmp.eq.s32.totalorder %s25, 1
      %p111 = por %p109, %p110
      %p113 = scmp.ne.s32.totalorder %s98, %s112
      %p114 = scmp.eq.s32.totalorder %s25, 0
      %p115 = por %p113, %p114
      %s117 = sadd.s32 %s116, 1
      %p120 = scmp.eq.s32.totalorder %s19, 1
      %p121 = scmp.ne.s32.totalorder %s116, %s118
      %p122 = scmp.eq.s32.totalorder %s19, 0
      %p123 = por %p121, %p122
      %p124 = scmp.ne.s32.totalorder %s116, %s118
      %p125 = scmp.eq.s32.totalorder %s24, 1
      %p126 = por %p124, %p125
      %p127 = scmp.ne.s32.totalorder %s118, %s119
      %p128 = scmp.eq.s32.totalorder %s24, 0
      %p129 = por %p127, %p128
      %p130 = scmp.ne.s32.totalorder %s118, %s119
      %p131 = scmp.eq.s32.totalorder %s25, 1
      %p132 = por %p130, %p131
      %p134 = scmp.ne.s32.totalorder %s119, %s133
      %p135 = scmp.eq.s32.totalorder %s25, 0
      %p136 = por %p134, %p135
      %s137 = ssub.s32 %s19, %s26
      %p138 = scmp.eq.s32.totalorder %s137, 0
      %s140 = sadd.s32 %s139, 1
      %s141 = scalar_select %p138, %s139, %s140
      %p144 = pneg %p138
      %p145 = scmp.eq.s32.totalorder %s19, 1
      %p146 = por %p144, %p145
      %p147 = scmp.ne.s32.totalorder %s139, %s142
      %p148 = scmp.eq.s32.totalorder %s19, 0
      %p149 = por %p147, %p148
      %p150 = scmp.ne.s32.totalorder %s139, %s142
      %p151 = scmp.eq.s32.totalorder %s24, 1
      %p152 = por %p150, %p151
      %p153 = scmp.ne.s32.totalorder %s142, %s143
      %p154 = scmp.eq.s32.totalorder %s24, 0
      %p155 = por %p153, %p154
      %p156 = scmp.ne.s32.totalorder %s142, %s143
      %p157 = scmp.eq.s32.totalorder %s25, 1
      %p158 = por %p156, %p157
      %p160 = scmp.ne.s32.totalorder %s143, %s159
      %p161 = scmp.eq.s32.totalorder %s25, 0
      %p162 = por %p160, %p161
      %p163 = scmp.le.s32.totalorder 1, %s19
      %p164 = scmp.lt.s32.totalorder %s19, 3
      %p165 = pnand %p163, %p164
      %p166 = pneg %p165
      // Predicated region
      $region9: #{tpu_custom_call.1} parent=5 // pred_check
        _
      $region10: #{tpu_custom_call.1} parent=5 // pred_check_branch
        %168 = sbr.rel (%p165) target = $region12
      $region11: #{tpu_custom_call.1} parent=5 // pred_region
        %s169 = ssub.s32 %s19, 1
        // Predicated region
        $region13: #{tpu_custom_call.1} parent=11 // pred_check
          %p170 = pneg %p66
        $region14: #{tpu_custom_call.1} parent=11 // pred_check_branch
          %172 = sbr.rel (%p170) target = $region16
        $region15: #{tpu_custom_call.1} parent=11 // pred_region
          %s174 = ssub.s32 4096, 4096
          %175 = vsyncadd [#allocation6], %s174
          %s176 = sshll.u32 [#allocation5], 4
          %s177 = int_to_ptr.vmem [resolvable:$true] %s176
          %182 = dma.hbm_to_vmem [thread:$0]  %s1, 4096, %s177, [#allocation6], 128, 128, 8
        $region16: #{tpu_custom_call.1} parent=11 // pred_fallthru
          _
        // Predicated region
        $region17: #{tpu_custom_call.1} parent=11 // pred_check
          %p183 = pneg %p87
        $region18: #{tpu_custom_call.1} parent=11 // pred_check_branch
          %185 = sbr.rel (%p183) target = $region20
        $region19: #{tpu_custom_call.1} parent=11 // pred_region
          %s187 = ssub.s32 1024, 1024
          %188 = vsyncadd [#allocation6], %s187
          %s189 = sshll.u32 [#allocation7], 4
          %s190 = int_to_ptr.vmem [resolvable:$true] %s189
          %195 = dma.hbm_to_vmem [thread:$0]  %s2, 1024, %s190, [#allocation6], 64, 64, 4
        $region20: #{tpu_custom_call.1} parent=11 // pred_fallthru
          _
        // Predicated region
        $region21: #{tpu_custom_call.1} parent=11 // pred_check
          %p196 = pneg %p108
        $region22: #{tpu_custom_call.1} parent=11 // pred_check_branch
          %198 = sbr.rel (%p196) target = $region24
        $region23: #{tpu_custom_call.1} parent=11 // pred_region
          %s200 = ssub.s32 1024, 1024
          %201 = vsyncadd [#allocation9], %s200
          %s202 = sshll.u32 [#allocation8], 4
          %s203 = int_to_ptr.vmem [resolvable:$true] %s202
          %208 = dma.hbm_to_vmem [thread:$0]  %s3, 1024, %s203, [#allocation9], 64, 64, 4
        $region24: #{tpu_custom_call.1} parent=11 // pred_fallthru
          _
        // Predicated region
        $region25: #{tpu_custom_call.1} parent=11 // pred_check
          %p209 = pneg %p129
        $region26: #{tpu_custom_call.1} parent=11 // pred_check_branch
          %211 = sbr.rel (%p209) target = $region28
        $region27: #{tpu_custom_call.1} parent=11 // pred_region
          _
        $region28: #{tpu_custom_call.1} parent=11 // pred_fallthru
          _
      $region12: #{tpu_custom_call.1} parent=5 // pred_fallthru
        _
      %p212 = scmp.lt.s32.totalorder %s19, 2
      // Predicated region
      $region29: #{tpu_custom_call.1} parent=5 // pred_check
        %p213 = pneg %p212
      $region30: #{tpu_custom_call.1} parent=5 // pred_check_branch
        %215 = sbr.rel (%p213) target = $region32
      $region31: #{tpu_custom_call.1} parent=5 // pred_region
        // Predicated region
        $region33: #{tpu_custom_call.1} parent=31 // pred_check
          %p216 = pneg %p39
        $region34: #{tpu_custom_call.1} parent=31 // pred_check_branch
          %218 = sbr.rel (%p216) target = $region36
        $region35: #{tpu_custom_call.1} parent=31 // pred_region
          %s219 = sand.u32 %s29, 1
          %s220 = scalar_lea.sflag [#allocation3], %s219
          %s221 = sand.u32 %s29, 1
          %s222 = smul.addr %s221, 128
          %s223 = scalar_lea.vmem [#allocation2], %s222
          %s224 = smul.u32 16, %s19
          %s226 = ssub.s32 2048, 2048
          %227 = vsyncadd %s220, %s226
          %s228 = smul.addr %s224, 2
          %s229 = smul.addr %s228, 64
          %s230 = scalar_lea.hbm %s0, %s229
          %s231 = sshll.u32 %s223, 4
          %s232 = int_to_ptr.vmem [resolvable:$true] %s231
          %237 = dma.hbm_to_vmem [thread:$0]  %s230, 2048, %s232, %s220, 128, 128, 8
        $region36: #{tpu_custom_call.1} parent=31 // pred_fallthru
          _
      $region32: #{tpu_custom_call.1} parent=5 // pred_fallthru
        _
      %p238 = scmp.le.s32.totalorder 1, %s19
      %p239 = scmp.lt.s32.totalorder %s19, 3
      %p240 = pnand %p238, %p239
      %p241 = pneg %p240
      // Predicated region
      $region37: #{tpu_custom_call.1} parent=5 // pred_check
        _
      $region38: #{tpu_custom_call.1} parent=5 // pred_check_branch
        %243 = sbr.rel (%p240) target = $region40
      $region39: #{tpu_custom_call.1} parent=5 // pred_region
        %s244 = ssub.s32 %s19, 1
        %s245 = sand.u32 %s32, 1
        %s246 = scalar_lea.sflag [#allocation3], %s245
        %s247 = sand.u32 %s32, 1
        %s248 = smul.addr %s247, 128
        %s249 = scalar_lea.vmem [#allocation2], %s248
        // Predicated region
        $region41: #{tpu_custom_call.1} parent=39 // pred_check
          %p250 = pneg %p45
        $region42: #{tpu_custom_call.1} parent=39 // pred_check_branch
          %252 = sbr.rel (%p250) target = $region44
        $region43: #{tpu_custom_call.1} parent=39 // pred_region
          %253 = dma.done %s246, 2048
        $region44: #{tpu_custom_call.1} parent=39 // pred_fallthru
          _
        // Predicated region
        $region45: #{tpu_custom_call.1} parent=39 // pred_check
          %p254 = pneg %p66
        $region46: #{tpu_custom_call.1} parent=39 // pred_check_branch
          %256 = sbr.rel (%p254) target = $region48
        $region47: #{tpu_custom_call.1} parent=39 // pred_region
          %257 = dma.done [#allocation6], 4096
        $region48: #{tpu_custom_call.1} parent=39 // pred_fallthru
          _
        // Predicated region
        $region49: #{tpu_custom_call.1} parent=39 // pred_check
          %p258 = pneg %p87
        $region50: #{tpu_custom_call.1} parent=39 // pred_check_branch
          %260 = sbr.rel (%p258) target = $region52
        $region51: #{tpu_custom_call.1} parent=39 // pred_region
          %261 = dma.done [#allocation6], 1024
        $region52: #{tpu_custom_call.1} parent=39 // pred_fallthru
          _
        // Predicated region
        $region53: #{tpu_custom_call.1} parent=39 // pred_check
          %p262 = pneg %p108
        $region54: #{tpu_custom_call.1} parent=39 // pred_check_branch
          %264 = sbr.rel (%p262) target = $region56
        $region55: #{tpu_custom_call.1} parent=39 // pred_region
          %265 = dma.done [#allocation9], 1024
        $region56: #{tpu_custom_call.1} parent=39 // pred_fallthru
          _
        %s266 = sand.u32 %s32, 1
        %s267 = scalar_lea.sflag [#allocation3], %s266
        %s268 = sand.u32 %s32, 1
        %s269 = smul.addr %s268, 128
        %s270 = scalar_lea.vmem [#allocation2], %s269
        %p271 = pneg %p45
        %p272 = pneg %p42
        %p273 = pneg %p66
        %p274 = pneg %p63
        %p275 = pneg %p87
        %p276 = pneg %p84
        %p277 = pneg %p108
        %p278 = pneg %p105
        %p279 = pneg %p129
        %p280 = pneg %p126
        %p281 = pneg %p155
        %p282 = pneg %p152
        %s283 = sand.u32 %s142, 1
        %s284 = scalar_lea.sflag [#allocation4], %s283
        %s285 = sand.u32 %s142, 1
        %s286 = smul.addr %s285, 128
        %s287 = scalar_lea.vmem [#allocation10], %s286
        %s288 = smul.u32 16, %s24
        %s289 = smul.u32 16, %s24
        %s291 = smul.u32 %s24, 128
        %v292 = vld [vmem:[#allocation5] sm:$0xff]
        %v293 = vld [vmem:[#allocation5 + $0x8] sm:$0xff]
        %v294 = vld [vmem:[#allocation5 + $0x10] sm:$0xff]
        %v295 = vld [vmem:[#allocation5 + $0x18] sm:$0xff]
        %v296 = vld [vmem:[#allocation5 + $0x20] sm:$0xff]
        %v297 = vld [vmem:[#allocation5 + $0x28] sm:$0xff]
        %v298 = vld [vmem:[#allocation5 + $0x30] sm:$0xff]
        %v299 = vld [vmem:[#allocation5 + $0x38] sm:$0xff]
        %v300 = vld [vmem:[#allocation5 + $0x40] sm:$0xff]
        %v301 = vld [vmem:[#allocation5 + $0x48] sm:$0xff]
        %v302 = vld [vmem:[#allocation5 + $0x50] sm:$0xff]
        %v303 = vld [vmem:[#allocation5 + $0x58] sm:$0xff]
        %v304 = vld [vmem:[#allocation5 + $0x60] sm:$0xff]
        %v305 = vld [vmem:[#allocation5 + $0x68] sm:$0xff]
        %v306 = vld [vmem:[#allocation5 + $0x70] sm:$0xff]
        %v307 = vld [vmem:[#allocation5 + $0x78] sm:$0xff]
        %v308 = vld [vmem:[#allocation5 + $0x80] sm:$0xff]
        %v309 = vld [vmem:[#allocation5 + $0x88] sm:$0xff]
        %v310 = vld [vmem:[#allocation5 + $0x90] sm:$0xff]
        %v311 = vld [vmem:[#allocation5 + $0x98] sm:$0xff]
        %v312 = vld [vmem:[#allocation5 + $0xa0] sm:$0xff]
        %v313 = vld [vmem:[#allocation5 + $0xa8] sm:$0xff]
        %v314 = vld [vmem:[#allocation5 + $0xb0] sm:$0xff]
        %v315 = vld [vmem:[#allocation5 + $0xb8] sm:$0xff]
        %v316 = vld [vmem:[#allocation5 + $0xc0] sm:$0xff]
        %v317 = vld [vmem:[#allocation5 + $0xc8] sm:$0xff]
        %v318 = vld [vmem:[#allocation5 + $0xd0] sm:$0xff]
        %v319 = vld [vmem:[#allocation5 + $0xd8] sm:$0xff]
        %v320 = vld [vmem:[#allocation5 + $0xe0] sm:$0xff]
        %v321 = vld [vmem:[#allocation5 + $0xe8] sm:$0xff]
        %v322 = vld [vmem:[#allocation5 + $0xf0] sm:$0xff]
        %v323 = vld [vmem:[#allocation5 + $0xf8] sm:$0xff]
        %s324 = scalar_lea.vmem [#allocation5], %s291
        %v325 = vld [vmem:[%s324] sm:$0xff]
        %v326 = vld [vmem:[%s324 + $0x8] sm:$0xff]
        %v327 = vld [vmem:[%s324 + $0x10] sm:$0xff]
        %v328 = vld [vmem:[%s324 + $0x18] sm:$0xff]
        %v329 = vld [vmem:[%s324 + $0x20] sm:$0xff]
        %v330 = vld [vmem:[%s324 + $0x28] sm:$0xff]
        %v331 = vld [vmem:[%s324 + $0x30] sm:$0xff]
        %v332 = vld [vmem:[%s324 + $0x38] sm:$0xff]
        %v333 = vld [vmem:[%s324 + $0x40] sm:$0xff]
        %v334 = vld [vmem:[%s324 + $0x48] sm:$0xff]
        %v335 = vld [vmem:[%s324 + $0x50] sm:$0xff]
        %v336 = vld [vmem:[%s324 + $0x58] sm:$0xff]
        %v337 = vld [vmem:[%s324 + $0x60] sm:$0xff]
        %v338 = vld [vmem:[%s324 + $0x68] sm:$0xff]
        %v339 = vld [vmem:[%s324 + $0x70] sm:$0xff]
        %v340 = vld [vmem:[%s324 + $0x78] sm:$0xff]
        %v341 = vld [vmem:[%s4] sm:$0x3]
        %v342 = vld [vmem:[%s249] sm:$0xff]
        %v343 = vld [vmem:[%s249 + $0x8] sm:$0xff]
        %v344 = vld [vmem:[%s249 + $0x10] sm:$0xff]
        %v345 = vld [vmem:[%s249 + $0x18] sm:$0xff]
        %v346 = vld [vmem:[%s249 + $0x20] sm:$0xff]
        %v347 = vld [vmem:[%s249 + $0x28] sm:$0xff]
        %v348 = vld [vmem:[%s249 + $0x30] sm:$0xff]
        %v349 = vld [vmem:[%s249 + $0x38] sm:$0xff]
        %v350 = vld [vmem:[%s249 + $0x40] sm:$0xff]
        %v351 = vld [vmem:[%s249 + $0x48] sm:$0xff]
        %v352 = vld [vmem:[%s249 + $0x50] sm:$0xff]
        %v353 = vld [vmem:[%s249 + $0x58] sm:$0xff]
        %v354 = vld [vmem:[%s249 + $0x60] sm:$0xff]
        %v355 = vld [vmem:[%s249 + $0x68] sm:$0xff]
        %v356 = vld [vmem:[%s249 + $0x70] sm:$0xff]
        %v357 = vld [vmem:[%s249 + $0x78] sm:$0xff]
        %v358 = vmax.f32 %v292, 0.0
        %v359 = vmax.f32 %v293, 0.0
        %v360 = vmax.f32 %v294, 0.0
        %v361 = vmax.f32 %v295, 0.0
        %v362 = vmax.f32 %v296, 0.0
        %v363 = vmax.f32 %v297, 0.0
        %v364 = vmax.f32 %v298, 0.0
        %v365 = vmax.f32 %v299, 0.0
        %v366 = vmax.f32 %v300, 0.0
        %v367 = vmax.f32 %v301, 0.0
        %v368 = vmax.f32 %v302, 0.0
        %v369 = vmax.f32 %v303, 0.0
        %v370 = vmax.f32 %v304, 0.0
        %v371 = vmax.f32 %v305, 0.0
        %v372 = vmax.f32 %v306, 0.0
        %v373 = vmax.f32 %v307, 0.0
        %v374 = vmax.f32 %v308, 0.0
        %v375 = vmax.f32 %v309, 0.0
        %v376 = vmax.f32 %v310, 0.0
        %v377 = vmax.f32 %v311, 0.0
        %v378 = vmax.f32 %v312, 0.0
        %v379 = vmax.f32 %v313, 0.0
        %v380 = vmax.f32 %v314, 0.0
        %v381 = vmax.f32 %v315, 0.0
        %v382 = vmax.f32 %v316, 0.0
        %v383 = vmax.f32 %v317, 0.0
        %v384 = vmax.f32 %v318, 0.0
        %v385 = vmax.f32 %v319, 0.0
        %v386 = vmax.f32 %v320, 0.0
        %v387 = vmax.f32 %v321, 0.0
        %v388 = vmax.f32 %v322, 0.0
        %v389 = vmax.f32 %v323, 0.0
        %v390 = vpack.c.bf16 %v359, %v358
        %v391 = vpack.c.bf16 %v361, %v360
        %v392 = vpack.c.bf16 %v363, %v362
        %v393 = vpack.c.bf16 %v365, %v364
        %v394 = vpack.c.bf16 %v367, %v366
        %v395 = vpack.c.bf16 %v369, %v368
        %v396 = vpack.c.bf16 %v371, %v370
        %v397 = vpack.c.bf16 %v373, %v372
        %v398 = vpack.c.bf16 %v375, %v374
        %v399 = vpack.c.bf16 %v377, %v376
        %v400 = vpack.c.bf16 %v379, %v378
        %v401 = vpack.c.bf16 %v381, %v380
        %v402 = vpack.c.bf16 %v383, %v382
        %v403 = vpack.c.bf16 %v385, %v384
        %v404 = vpack.c.bf16 %v387, %v386
        %v405 = vpack.c.bf16 %v389, %v388
        %v422 = vunpack.c.l.b16 %v342
        %v423 = vunpack.c.h.b16 %v342
        %v424 = vunpack.c.l.b16 %v343
        %v425 = vunpack.c.h.b16 %v343
        %v426 = vunpack.c.l.b16 %v344
        %v427 = vunpack.c.h.b16 %v344
        %v428 = vunpack.c.l.b16 %v345
        %v429 = vunpack.c.h.b16 %v345
        %v430 = vunpack.c.l.b16 %v346
        %v431 = vunpack.c.h.b16 %v346
        %v432 = vunpack.c.l.b16 %v347
        %v433 = vunpack.c.h.b16 %v347
        %v434 = vunpack.c.l.b16 %v348
        %v435 = vunpack.c.h.b16 %v348
        %v436 = vunpack.c.l.b16 %v349
        %v437 = vunpack.c.h.b16 %v349
        %v438 = vunpack.c.l.b16 %v350
        %v439 = vunpack.c.h.b16 %v350
        %v440 = vunpack.c.l.b16 %v351
        %v441 = vunpack.c.h.b16 %v351
        %v442 = vunpack.c.l.b16 %v352
        %v443 = vunpack.c.h.b16 %v352
        %v444 = vunpack.c.l.b16 %v353
        %v445 = vunpack.c.h.b16 %v353
        %v446 = vunpack.c.l.b16 %v354
        %v447 = vunpack.c.h.b16 %v354
        %v448 = vunpack.c.l.b16 %v355
        %v449 = vunpack.c.h.b16 %v355
        %v450 = vunpack.c.l.b16 %v356
        %v451 = vunpack.c.h.b16 %v356
        %v452 = vunpack.c.l.b16 %v357
        %v453 = vunpack.c.h.b16 %v357
        %v454 = vpack.c.b16 %v424, %v422
        %v455 = vpack.c.b16 %v425, %v423
        %v456 = vpack.c.b16 %v428, %v426
        %v457 = vpack.c.b16 %v429, %v427
        %v458 = vpack.c.b16 %v432, %v430
        %v459 = vpack.c.b16 %v433, %v431
        %v460 = vpack.c.b16 %v436, %v434
        %v461 = vpack.c.b16 %v437, %v435
        %v462 = vpack.c.b16 %v440, %v438
        %v463 = vpack.c.b16 %v441, %v439
        %v464 = vpack.c.b16 %v444, %v442
        %v465 = vpack.c.b16 %v445, %v443
        %v466 = vpack.c.b16 %v448, %v446
        %v467 = vpack.c.b16 %v449, %v447
        %v468 = vpack.c.b16 %v452, %v450
        %v469 = vpack.c.b16 %v453, %v451
        %486 = vmatprep.subr.bf16.mxu0 0
        %487 = vmatpush1.bf16.msra.mxu0 %v390
        %488 = vmatprep.subr.bf16.mxu0 0
        %489 = vmatpush1.bf16.msra.mxu0 %v391
        %490 = vmatprep.subr.bf16.mxu0 0
        %491 = vmatpush1.bf16.msra.mxu0 %v392
        %492 = vmatprep.subr.bf16.mxu0 0
        %493 = vmatpush1.bf16.msra.mxu0 %v393
        %494 = vmatprep.subr.bf16.mxu0 0
        %495 = vmatpush1.bf16.msra.mxu0 %v394
        %496 = vmatprep.subr.bf16.mxu0 0
        %497 = vmatpush1.bf16.msra.mxu0 %v395
        %498 = vmatprep.subr.bf16.mxu0 0
        %499 = vmatpush1.bf16.msra.mxu0 %v396
        %500 = vmatprep.subr.bf16.mxu0 0
        %501 = vmatpush1.bf16.msra.mxu0 %v397
        %502 = vmatprep.subr.bf16.mxu0 0
        %503 = vmatpush1.bf16.msra.mxu0 %v398
        %504 = vmatprep.subr.bf16.mxu0 0
        %505 = vmatpush1.bf16.msra.mxu0 %v399
        %506 = vmatprep.subr.bf16.mxu0 0
        %507 = vmatpush1.bf16.msra.mxu0 %v400
        %508 = vmatprep.subr.bf16.mxu0 0
        %509 = vmatpush1.bf16.msra.mxu0 %v401
        %510 = vmatprep.subr.bf16.mxu0 0
        %511 = vmatpush1.bf16.msra.mxu0 %v402
        %512 = vmatprep.subr.bf16.mxu0 0
        %513 = vmatpush1.bf16.msra.mxu0 %v403
        %514 = vmatprep.subr.bf16.mxu0 0
        %515 = vmatpush1.bf16.msra.mxu0 %v404
        %516 = vmatprep.subr.bf16.mxu0 0
        %517 = vmatpush1.bf16.msra.mxu0 %v405
        %518 = vmatprep.mubr.bf16.mxu0 %v455
        %519 = vmatmul.mubr.bf16.gmra.mrb[0].mxu0 %v454
        %v520 = vpop.f32.mrb[0].mxu0
        %v521 = vadd.f32 0.0, %v520
        %v522 = vpop.f32.mrb[0].mxu0
        %v523 = vpop.f32.mrb[0].mxu0
        %v524 = vadd.f32 0.0, %v523
        %v525 = vpop.f32.mrb[0].mxu0
        %526 = vmatprep.mubr.bf16.mxu0 %v457
        %527 = vmatmul.mubr.bf16.gmra.mrb[0].mxu0 %v456
        %v528 = vpop.f32.mrb[0].mxu0
        %v529 = vadd.f32 0.0, %v528
        %v530 = vpop.f32.mrb[0].mxu0
        %v531 = vpop.f32.mrb[0].mxu0
        %v532 = vadd.f32 0.0, %v531
        %v533 = vpop.f32.mrb[0].mxu0
        %534 = vmatprep.mubr.bf16.mxu0 %v459
        %535 = vmatmul.mubr.bf16.gmra.mrb[0].mxu0 %v458
        %v536 = vpop.f32.mrb[0].mxu0
        %v537 = vadd.f32 0.0, %v536
        %v538 = vpop.f32.mrb[0].mxu0
        %v539 = vpop.f32.mrb[0].mxu0
        %v540 = vadd.f32 0.0, %v539
        %v541 = vpop.f32.mrb[0].mxu0
        %542 = vmatprep.mubr.bf16.mxu0 %v461
        %543 = vmatmul.mubr.bf16.gmra.mrb[0].mxu0 %v460
        %v544 = vpop.f32.mrb[0].mxu0
        %v545 = vadd.f32 0.0, %v544
        %v546 = vpop.f32.mrb[0].mxu0
        %v547 = vpop.f32.mrb[0].mxu0
        %v548 = vadd.f32 0.0, %v547
        %v549 = vpop.f32.mrb[0].mxu0
        %550 = vmatprep.mubr.bf16.mxu0 %v463
        %551 = vmatmul.mubr.bf16.gmra.mrb[0].mxu0 %v462
        %v552 = vpop.f32.mrb[0].mxu0
        %v553 = vadd.f32 0.0, %v552
        %v554 = vpop.f32.mrb[0].mxu0
        %v555 = vpop.f32.mrb[0].mxu0
        %v556 = vadd.f32 0.0, %v555
        %v557 = vpop.f32.mrb[0].mxu0
        %558 = vmatprep.mubr.bf16.mxu0 %v465
        %559 = vmatmul.mubr.bf16.gmra.mrb[0].mxu0 %v464
        %v560 = vpop.f32.mrb[0].mxu0
        %v561 = vadd.f32 0.0, %v560
        %v562 = vpop.f32.mrb[0].mxu0
        %v563 = vpop.f32.mrb[0].mxu0
        %v564 = vadd.f32 0.0, %v563
        %v565 = vpop.f32.mrb[0].mxu0
        %566 = vmatprep.mubr.bf16.mxu0 %v467
        %567 = vmatmul.mubr.bf16.gmra.mrb[0].mxu0 %v466
        %v568 = vpop.f32.mrb[0].mxu0
        %v569 = vadd.f32 0.0, %v568
        %v570 = vpop.f32.mrb[0].mxu0
        %v571 = vpop.f32.mrb[0].mxu0
        %v572 = vadd.f32 0.0, %v571
        %v573 = vpop.f32.mrb[0].mxu0
        %574 = vmatprep.mubr.bf16.mxu0 %v469
        %575 = vmatmul.mubr.bf16.gmra.mrb[0].mxu0 %v468
        %v576 = vpop.f32.mrb[0].mxu0
        %v577 = vadd.f32 0.0, %v576
        %v578 = vpop.f32.mrb[0].mxu0
        %v579 = vpop.f32.mrb[0].mxu0
        %v580 = vadd.f32 0.0, %v579
        %v581 = vpop.f32.mrb[0].mxu0
        %582 = vdwg.mxu0
        %v583 = vadd.f32 %v325, %v521
        %v584 = vadd.f32 %v326, %v524
        %v585 = vadd.f32 %v327, %v529
        %v586 = vadd.f32 %v328, %v532
        %v587 = vadd.f32 %v329, %v537
        %v588 = vadd.f32 %v330, %v540
        %v589 = vadd.f32 %v331, %v545
        %v590 = vadd.f32 %v332, %v548
        %v591 = vadd.f32 %v333, %v553
        %v592 = vadd.f32 %v334, %v556
        %v593 = vadd.f32 %v335, %v561
        %v594 = vadd.f32 %v336, %v564
        %v595 = vadd.f32 %v337, %v569
        %v596 = vadd.f32 %v338, %v572
        %v597 = vadd.f32 %v339, %v577
        %v598 = vadd.f32 %v340, %v580
        %v599 = vpack.c.bf16 %v584, %v583
        %v600 = vpack.c.bf16 %v586, %v585
        %v601 = vpack.c.bf16 %v588, %v587
        %v602 = vpack.c.bf16 %v590, %v589
        %v603 = vpack.c.bf16 %v592, %v591
        %v604 = vpack.c.bf16 %v594, %v593
        %v605 = vpack.c.bf16 %v596, %v595
        %v606 = vpack.c.bf16 %v598, %v597
        %v607 = vld [vmem:[#allocation7] sm:$0xf]
        %v608 = vld [vmem:[#allocation7 + $0x4] sm:$0xf]
        %v609 = vld [vmem:[#allocation7 + $0x8] sm:$0xf]
        %v610 = vld [vmem:[#allocation7 + $0xc] sm:$0xf]
        %v611 = vld [vmem:[#allocation7 + $0x10] sm:$0xf]
        %v612 = vld [vmem:[#allocation7 + $0x14] sm:$0xf]
        %v613 = vld [vmem:[#allocation7 + $0x18] sm:$0xf]
        %v614 = vld [vmem:[#allocation7 + $0x1c] sm:$0xf]
        %v615 = vld [vmem:[#allocation7 + $0x20] sm:$0xf]
        %v616 = vld [vmem:[#allocation7 + $0x24] sm:$0xf]
        %v617 = vld [vmem:[#allocation7 + $0x28] sm:$0xf]
        %v618 = vld [vmem:[#allocation7 + $0x2c] sm:$0xf]
        %v619 = vld [vmem:[#allocation7 + $0x30] sm:$0xf]
        %v620 = vld [vmem:[#allocation7 + $0x34] sm:$0xf]
        %v621 = vld [vmem:[#allocation7 + $0x38] sm:$0xf]
        %v622 = vld [vmem:[#allocation7 + $0x3c] sm:$0xf]
        %v623 = vlaneseq
        %v624 = vshrl.u32 %v623, 7
        %v625 = vsub.s32 0, %v624
        %v626 = vrot.slane %v341, %v625
        %v643 = vunpack.c.l.b16 %v607
        %v644 = vunpack.c.l.b16 %v608
        %v645 = vunpack.c.l.b16 %v609
        %v646 = vunpack.c.l.b16 %v610
        %v647 = vunpack.c.l.b16 %v611
        %v648 = vunpack.c.l.b16 %v612
        %v649 = vunpack.c.l.b16 %v613
        %v650 = vunpack.c.l.b16 %v614
        %v651 = vunpack.c.l.b16 %v615
        %v652 = vunpack.c.l.b16 %v616
        %v653 = vunpack.c.l.b16 %v617
        %v654 = vunpack.c.l.b16 %v618
        %v655 = vunpack.c.l.b16 %v619
        %v656 = vunpack.c.l.b16 %v620
        %v657 = vunpack.c.l.b16 %v621
        %v658 = vunpack.c.l.b16 %v622
        %v659 = vpack.c.b16 %v644, %v643
        %v660 = vpack.c.b16 %v646, %v645
        %v661 = vpack.c.b16 %v648, %v647
        %v662 = vpack.c.b16 %v650, %v649
        %v663 = vpack.c.b16 %v652, %v651
        %v664 = vpack.c.b16 %v654, %v653
        %v665 = vpack.c.b16 %v656, %v655
        %v666 = vpack.c.b16 %v658, %v657
        %675 = vmatprep.subr.bf16.mxu0 0
        %676 = vmatpush1.bf16.msra.mxu0 %v659
        %677 = vmatprep.subr.bf16.mxu0 0
        %678 = vmatpush1.bf16.msra.mxu0 %v660
        %679 = vmatprep.subr.bf16.mxu0 0
        %680 = vmatpush1.bf16.msra.mxu0 %v661
        %681 = vmatprep.subr.bf16.mxu0 0
        %682 = vmatpush1.bf16.msra.mxu0 %v662
        %683 = vmatprep.subr.bf16.mxu0 0
        %684 = vmatpush1.bf16.msra.mxu0 %v663
        %685 = vmatprep.subr.bf16.mxu0 0
        %686 = vmatpush1.bf16.msra.mxu0 %v664
        %687 = vmatprep.subr.bf16.mxu0 0
        %688 = vmatpush1.bf16.msra.mxu0 %v665
        %689 = vmatprep.subr.bf16.mxu0 0
        %690 = vmatpush1.bf16.msra.mxu0 %v666
        %691 = vmatprep.subr.bf16.mxu0 0
        %692 = vmatpush1.bf16.msra.mxu0 0
        %693 = vmatprep.subr.bf16.mxu0 0
        %694 = vmatpush1.bf16.msra.mxu0 0
        %695 = vmatprep.subr.bf16.mxu0 0
        %696 = vmatpush1.bf16.msra.mxu0 0
        %697 = vmatprep.subr.bf16.mxu0 0
        %698 = vmatpush1.bf16.msra.mxu0 0
        %699 = vmatprep.subr.bf16.mxu0 0
        %700 = vmatpush1.bf16.msra.mxu0 0
        %701 = vmatprep.subr.bf16.mxu0 0
        %702 = vmatpush1.bf16.msra.mxu0 0
        %703 = vmatprep.subr.bf16.mxu0 0
        %704 = vmatpush1.bf16.msra.mxu0 0
        %705 = vmatprep.subr.bf16.mxu0 0
        %706 = vmatpush1.bf16.msra.mxu0 0
        %707 = vmatprep.mubr.bf16.mxu0 0
        %708 = vmatmul.mubr.bf16.gmra.mrb[0].mxu0 %v599
        %v709 = vpop.f32.mrb[0].mxu0
        %v710 = vadd.f32 %v626, %v709
        %v711 = vpop.f32.mrb[0].mxu0
        %v712 = vpop.f32.mrb[0].mxu0
        %v713 = vadd.f32 %v626, %v712
        %v714 = vpop.f32.mrb[0].mxu0
        %715 = vmatprep.mubr.bf16.mxu0 0
        %716 = vmatmul.mubr.bf16.gmra.mrb[0].mxu0 %v600
        %v717 = vpop.f32.mrb[0].mxu0
        %v718 = vadd.f32 %v626, %v717
        %v719 = vpop.f32.mrb[0].mxu0
        %v720 = vpop.f32.mrb[0].mxu0
        %v721 = vadd.f32 %v626, %v720
        %v722 = vpop.f32.mrb[0].mxu0
        %723 = vmatprep.mubr.bf16.mxu0 0
        %724 = vmatmul.mubr.bf16.gmra.mrb[0].mxu0 %v601
        %v725 = vpop.f32.mrb[0].mxu0
        %v726 = vadd.f32 %v626, %v725
        %v727 = vpop.f32.mrb[0].mxu0
        %v728 = vpop.f32.mrb[0].mxu0
        %v729 = vadd.f32 %v626, %v728
        %v730 = vpop.f32.mrb[0].mxu0
        %731 = vmatprep.mubr.bf16.mxu0 0
        %732 = vmatmul.mubr.bf16.gmra.mrb[0].mxu0 %v602
        %v733 = vpop.f32.mrb[0].mxu0
        %v734 = vadd.f32 %v626, %v733
        %v735 = vpop.f32.mrb[0].mxu0
        %v736 = vpop.f32.mrb[0].mxu0
        %v737 = vadd.f32 %v626, %v736
        %v738 = vpop.f32.mrb[0].mxu0
        %739 = vmatprep.mubr.bf16.mxu0 0
        %740 = vmatmul.mubr.bf16.gmra.mrb[0].mxu0 %v603
        %v741 = vpop.f32.mrb[0].mxu0
        %v742 = vadd.f32 %v626, %v741
        %v743 = vpop.f32.mrb[0].mxu0
        %v744 = vpop.f32.mrb[0].mxu0
        %v745 = vadd.f32 %v626, %v744
        %v746 = vpop.f32.mrb[0].mxu0
        %747 = vmatprep.mubr.bf16.mxu0 0
        %748 = vmatmul.mubr.bf16.gmra.mrb[0].mxu0 %v604
        %v749 = vpop.f32.mrb[0].mxu0
        %v750 = vadd.f32 %v626, %v749
        %v751 = vpop.f32.mrb[0].mxu0
        %v752 = vpop.f32.mrb[0].mxu0
        %v753 = vadd.f32 %v626, %v752
        %v754 = vpop.f32.mrb[0].mxu0
        %755 = vmatprep.mubr.bf16.mxu0 0
        %756 = vmatmul.mubr.bf16.gmra.mrb[0].mxu0 %v605
        %v757 = vpop.f32.mrb[0].mxu0
        %v758 = vadd.f32 %v626, %v757
        %v759 = vpop.f32.mrb[0].mxu0
        %v760 = vpop.f32.mrb[0].mxu0
        %v761 = vadd.f32 %v626, %v760
        %v762 = vpop.f32.mrb[0].mxu0
        %763 = vmatprep.mubr.bf16.mxu0 0
        %764 = vmatmul.mubr.bf16.gmra.mrb[0].mxu0 %v606
        %v765 = vpop.f32.mrb[0].mxu0
        %v766 = vadd.f32 %v626, %v765
        %v767 = vpop.f32.mrb[0].mxu0
        %v768 = vpop.f32.mrb[0].mxu0
        %v769 = vadd.f32 %v626, %v768
        %v770 = vpop.f32.mrb[0].mxu0
        %771 = vdwg.mxu0
        %v772 = vmax.f32 %v710, 0.0
        %v773 = vmax.f32 %v713, 0.0
        %v774 = vmax.f32 %v718, 0.0
        %v775 = vmax.f32 %v721, 0.0
        %v776 = vmax.f32 %v726, 0.0
        %v777 = vmax.f32 %v729, 0.0
        %v778 = vmax.f32 %v734, 0.0
        %v779 = vmax.f32 %v737, 0.0
        %v780 = vmax.f32 %v742, 0.0
        %v781 = vmax.f32 %v745, 0.0
        %v782 = vmax.f32 %v750, 0.0
        %v783 = vmax.f32 %v753, 0.0
        %v784 = vmax.f32 %v758, 0.0
        %v785 = vmax.f32 %v761, 0.0
        %v786 = vmax.f32 %v766, 0.0
        %v787 = vmax.f32 %v769, 0.0
        %v788 = vpack.c.bf16 %v773, %v772
        %v789 = vpack.c.bf16 %v775, %v774
        %v790 = vpack.c.bf16 %v777, %v776
        %v791 = vpack.c.bf16 %v779, %v778
        %v792 = vpack.c.bf16 %v781, %v780
        %v793 = vpack.c.bf16 %v783, %v782
        %v794 = vpack.c.bf16 %v785, %v784
        %v795 = vpack.c.bf16 %v787, %v786
        %v796 = vld [vmem:[#allocation8] sm:$0xf]
        %v797 = vld [vmem:[#allocation8 + $0x4] sm:$0xf]
        %v798 = vld [vmem:[#allocation8 + $0x8] sm:$0xf]
        %v799 = vld [vmem:[#allocation8 + $0xc] sm:$0xf]
        %v800 = vld [vmem:[#allocation8 + $0x10] sm:$0xf]
        %v801 = vld [vmem:[#allocation8 + $0x14] sm:$0xf]
        %v802 = vld [vmem:[#allocation8 + $0x18] sm:$0xf]
        %v803 = vld [vmem:[#allocation8 + $0x1c] sm:$0xf]
        %v804 = vld [vmem:[#allocation8 + $0x20] sm:$0xf]
        %v805 = vld [vmem:[#allocation8 + $0x24] sm:$0xf]
        %v806 = vld [vmem:[#allocation8 + $0x28] sm:$0xf]
        %v807 = vld [vmem:[#allocation8 + $0x2c] sm:$0xf]
        %v808 = vld [vmem:[#allocation8 + $0x30] sm:$0xf]
        %v809 = vld [vmem:[#allocation8 + $0x34] sm:$0xf]
        %v810 = vld [vmem:[#allocation8 + $0x38] sm:$0xf]
        %v811 = vld [vmem:[#allocation8 + $0x3c] sm:$0xf]
        %v812 = vlaneseq
        %v813 = vshrl.u32 %v812, 7
        %v814 = vsub.s32 1, %v813
        %v815 = vrot.slane %v341, %v814
        %v832 = vunpack.c.l.b16 %v796
        %v833 = vunpack.c.l.b16 %v797
        %v834 = vunpack.c.l.b16 %v798
        %v835 = vunpack.c.l.b16 %v799
        %v836 = vunpack.c.l.b16 %v800
        %v837 = vunpack.c.l.b16 %v801
        %v838 = vunpack.c.l.b16 %v802
        %v839 = vunpack.c.l.b16 %v803
        %v840 = vunpack.c.l.b16 %v804
        %v841 = vunpack.c.l.b16 %v805
        %v842 = vunpack.c.l.b16 %v806
        %v843 = vunpack.c.l.b16 %v807
        %v844 = vunpack.c.l.b16 %v808
        %v845 = vunpack.c.l.b16 %v809
        %v846 = vunpack.c.l.b16 %v810
        %v847 = vunpack.c.l.b16 %v811
        %v848 = vpack.c.b16 %v833, %v832
        %v849 = vpack.c.b16 %v835, %v834
        %v850 = vpack.c.b16 %v837, %v836
        %v851 = vpack.c.b16 %v839, %v838
        %v852 = vpack.c.b16 %v841, %v840
        %v853 = vpack.c.b16 %v843, %v842
        %v854 = vpack.c.b16 %v845, %v844
        %v855 = vpack.c.b16 %v847, %v846
        %864 = vmatprep.subr.bf16.mxu0 0
        %865 = vmatpush1.bf16.msra.mxu0 %v848
        %866 = vmatprep.subr.bf16.mxu0 0
        %867 = vmatpush1.bf16.msra.mxu0 %v849
        %868 = vmatprep.subr.bf16.mxu0 0
        %869 = vmatpush1.bf16.msra.mxu0 %v850
        %870 = vmatprep.subr.bf16.mxu0 0
        %871 = vmatpush1.bf16.msra.mxu0 %v851
        %872 = vmatprep.subr.bf16.mxu0 0
        %873 = vmatpush1.bf16.msra.mxu0 %v852
        %874 = vmatprep.subr.bf16.mxu0 0
        %875 = vmatpush1.bf16.msra.mxu0 %v853
        %876 = vmatprep.subr.bf16.mxu0 0
        %877 = vmatpush1.bf16.msra.mxu0 %v854
        %878 = vmatprep.subr.bf16.mxu0 0
        %879 = vmatpush1.bf16.msra.mxu0 %v855
        %880 = vmatprep.subr.bf16.mxu0 0
        %881 = vmatpush1.bf16.msra.mxu0 0
        %882 = vmatprep.subr.bf16.mxu0 0
        %883 = vmatpush1.bf16.msra.mxu0 0
        %884 = vmatprep.subr.bf16.mxu0 0
        %885 = vmatpush1.bf16.msra.mxu0 0
        %886 = vmatprep.subr.bf16.mxu0 0
        %887 = vmatpush1.bf16.msra.mxu0 0
        %888 = vmatprep.subr.bf16.mxu0 0
        %889 = vmatpush1.bf16.msra.mxu0 0
        %890 = vmatprep.subr.bf16.mxu0 0
        %891 = vmatpush1.bf16.msra.mxu0 0
        %892 = vmatprep.subr.bf16.mxu0 0
        %893 = vmatpush1.bf16.msra.mxu0 0
        %894 = vmatprep.subr.bf16.mxu0 0
        %895 = vmatpush1.bf16.msra.mxu0 0
        %896 = vmatprep.mubr.bf16.mxu0 0
        %897 = vmatmul.mubr.bf16.gmra.mrb[0].mxu0 %v788
        %v898 = vpop.f32.mrb[0].mxu0
        %v899 = vadd.f32 %v815, %v898
        %v900 = vpop.f32.mrb[0].mxu0
        %v901 = vpop.f32.mrb[0].mxu0
        %v902 = vadd.f32 %v815, %v901
        %v903 = vpop.f32.mrb[0].mxu0
        %904 = vmatprep.mubr.bf16.mxu0 0
        %905 = vmatmul.mubr.bf16.gmra.mrb[0].mxu0 %v789
        %v906 = vpop.f32.mrb[0].mxu0
        %v907 = vadd.f32 %v815, %v906
        %v908 = vpop.f32.mrb[0].mxu0
        %v909 = vpop.f32.mrb[0].mxu0
        %v910 = vadd.f32 %v815, %v909
        %v911 = vpop.f32.mrb[0].mxu0
        %912 = vmatprep.mubr.bf16.mxu0 0
        %913 = vmatmul.mubr.bf16.gmra.mrb[0].mxu0 %v790
        %v914 = vpop.f32.mrb[0].mxu0
        %v915 = vadd.f32 %v815, %v914
        %v916 = vpop.f32.mrb[0].mxu0
        %v917 = vpop.f32.mrb[0].mxu0
        %v918 = vadd.f32 %v815, %v917
        %v919 = vpop.f32.mrb[0].mxu0
        %920 = vmatprep.mubr.bf16.mxu0 0
        %921 = vmatmul.mubr.bf16.gmra.mrb[0].mxu0 %v791
        %v922 = vpop.f32.mrb[0].mxu0
        %v923 = vadd.f32 %v815, %v922
        %v924 = vpop.f32.mrb[0].mxu0
        %v925 = vpop.f32.mrb[0].mxu0
        %v926 = vadd.f32 %v815, %v925
        %v927 = vpop.f32.mrb[0].mxu0
        %928 = vmatprep.mubr.bf16.mxu0 0
        %929 = vmatmul.mubr.bf16.gmra.mrb[0].mxu0 %v792
        %v930 = vpop.f32.mrb[0].mxu0
        %v931 = vadd.f32 %v815, %v930
        %v932 = vpop.f32.mrb[0].mxu0
        %v933 = vpop.f32.mrb[0].mxu0
        %v934 = vadd.f32 %v815, %v933
        %v935 = vpop.f32.mrb[0].mxu0
        %936 = vmatprep.mubr.bf16.mxu0 0
        %937 = vmatmul.mubr.bf16.gmra.mrb[0].mxu0 %v793
        %v938 = vpop.f32.mrb[0].mxu0
        %v939 = vadd.f32 %v815, %v938
        %v940 = vpop.f32.mrb[0].mxu0
        %v941 = vpop.f32.mrb[0].mxu0
        %v942 = vadd.f32 %v815, %v941
        %v943 = vpop.f32.mrb[0].mxu0
        %944 = vmatprep.mubr.bf16.mxu0 0
        %945 = vmatmul.mubr.bf16.gmra.mrb[0].mxu0 %v794
        %v946 = vpop.f32.mrb[0].mxu0
        %v947 = vadd.f32 %v815, %v946
        %v948 = vpop.f32.mrb[0].mxu0
        %v949 = vpop.f32.mrb[0].mxu0
        %v950 = vadd.f32 %v815, %v949
        %v951 = vpop.f32.mrb[0].mxu0
        %952 = vmatprep.mubr.bf16.mxu0 0
        %953 = vmatmul.mubr.bf16.gmra.mrb[0].mxu0 %v795
        %v954 = vpop.f32.mrb[0].mxu0
        %v955 = vadd.f32 %v815, %v954
        %v956 = vpop.f32.mrb[0].mxu0
        %v957 = vpop.f32.mrb[0].mxu0
        %v958 = vadd.f32 %v815, %v957
        %v959 = vpop.f32.mrb[0].mxu0
        %960 = vdwg.mxu0
        %v961 = vmax.f32 %v899, 0.0
        %v962 = vmax.f32 %v902, 0.0
        %v963 = vmax.f32 %v907, 0.0
        %v964 = vmax.f32 %v910, 0.0
        %v965 = vmax.f32 %v915, 0.0
        %v966 = vmax.f32 %v918, 0.0
        %v967 = vmax.f32 %v923, 0.0
        %v968 = vmax.f32 %v926, 0.0
        %v969 = vmax.f32 %v931, 0.0
        %v970 = vmax.f32 %v934, 0.0
        %v971 = vmax.f32 %v939, 0.0
        %v972 = vmax.f32 %v942, 0.0
        %v973 = vmax.f32 %v947, 0.0
        %v974 = vmax.f32 %v950, 0.0
        %v975 = vmax.f32 %v955, 0.0
        %v976 = vmax.f32 %v958, 0.0
        %977 = vst [vmem:[%s287] sm:$0xff] %v961
        %978 = vst [vmem:[%s287 + $0x8] sm:$0xff] %v962
        %979 = vst [vmem:[%s287 + $0x10] sm:$0xff] %v963
        %980 = vst [vmem:[%s287 + $0x18] sm:$0xff] %v964
        %981 = vst [vmem:[%s287 + $0x20] sm:$0xff] %v965
        %982 = vst [vmem:[%s287 + $0x28] sm:$0xff] %v966
        %983 = vst [vmem:[%s287 + $0x30] sm:$0xff] %v967
        %984 = vst [vmem:[%s287 + $0x38] sm:$0xff] %v968
        %985 = vst [vmem:[%s287 + $0x40] sm:$0xff] %v969
        %986 = vst [vmem:[%s287 + $0x48] sm:$0xff] %v970
        %987 = vst [vmem:[%s287 + $0x50] sm:$0xff] %v971
        %988 = vst [vmem:[%s287 + $0x58] sm:$0xff] %v972
        %989 = vst [vmem:[%s287 + $0x60] sm:$0xff] %v973
        %990 = vst [vmem:[%s287 + $0x68] sm:$0xff] %v974
        %991 = vst [vmem:[%s287 + $0x70] sm:$0xff] %v975
        %992 = vst [vmem:[%s287 + $0x78] sm:$0xff] %v976
        %s993 = sand.u32 %s142, 1
        %s994 = scalar_lea.sflag [#allocation4], %s993
        %s995 = sand.u32 %s142, 1
        %s996 = smul.addr %s995, 128
        %s997 = scalar_lea.vmem [#allocation10], %s996
        // Predicated region
        $region57: #{tpu_custom_call.1} parent=39 // pred_check
          %p998 = pneg %p152
        $region58: #{tpu_custom_call.1} parent=39 // pred_check_branch
          %1000 = sbr.rel (%p998) target = $region60
        $region59: #{tpu_custom_call.1} parent=39 // pred_region
          %s1001 = smul.u32 16, %s24
          %s1003 = ssub.s32 2048, 2048
          %1004 = vsyncadd %s994, %s1003
          %s1005 = smul.addr %s1001, 128
          %s1006 = scalar_lea.hbm %s5, %s1005
          %s1007 = sshll.u32 %s997, 4
          %s1008 = int_to_ptr.vmem [resolvable:$true] %s1007
          %1013 = dma.vmem_to_hbm [thread:$0]  %s1008, 2048, %s1006, %s994, 128, 128, 8
        $region60: #{tpu_custom_call.1} parent=39 // pred_fallthru
          _
      $region40: #{tpu_custom_call.1} parent=5 // pred_fallthru
        _
      %p1014 = scmp.le.s32.totalorder 2, %s19
      // Predicated region
      $region61: #{tpu_custom_call.1} parent=5 // pred_check
        %p1015 = pneg %p1014
      $region62: #{tpu_custom_call.1} parent=5 // pred_check_branch
        %1017 = sbr.rel (%p1015) target = $region64
      $region63: #{tpu_custom_call.1} parent=5 // pred_region
        %s1018 = ssub.s32 %s19, 2
        // Predicated region
        $region65: #{tpu_custom_call.1} parent=63 // pred_check
          %p1019 = pneg %p158
        $region66: #{tpu_custom_call.1} parent=63 // pred_check_branch
          %1021 = sbr.rel (%p1019) target = $region68
        $region67: #{tpu_custom_call.1} parent=63 // pred_region
          %s1022 = sand.u32 %s143, 1
          %s1023 = scalar_lea.sflag [#allocation4], %s1022
          %s1024 = sand.u32 %s143, 1
          %s1025 = smul.addr %s1024, 128
          %s1026 = scalar_lea.vmem [#allocation10], %s1025
          %1027 = dma.done %s1023, 2048
        $region68: #{tpu_custom_call.1} parent=63 // pred_fallthru
          _
      $region64: #{tpu_custom_call.1} parent=5 // pred_fallthru
        _
    $region6: #{tpu_custom_call.1} parent=1 // loop_footer
      %s23 = sadd.s32 1, %s19
    $region7: #{tpu_custom_call.1} parent=1 // loop_footer_branch
      %18 = sbr.rel target = $region3
    $region8: #{tpu_custom_call.1} parent=1 // loop_exit
      _
    %1028 = vsyncpa [#allocation3], 1
    %s1029 = scalar_lea.sflag [#allocation3], 1
    %1030 = vsyncpa %s1029, 1
    %1031 = vsyncpa [#allocation6], 1
    %1032 = vsyncpa [#allocation9], 1
    %1033 = vsyncpa [#allocation4], 1
    %s1034 = scalar_lea.sflag [#allocation4], 1
    %1035 = vsyncpa %s1034, 1

</llo_original>
